<compile_context>
chip_gen: v7x
topology: tpu7x:2x2x1
jax: 0.10.0
libtpu: 0.0.40
codegen_flags: <defaults>
</compile_context>

<pallas_src>
import functools

import jax
import jax.numpy as jnp
from jax import lax
from jax.experimental import pallas as pl
from jax.experimental.pallas import tpu as pltpu


def _round_up(x, m):
    return ((x + m - 1) // m) * m


def _cdiv(a, b):
    return -(-a // b)


def _padded_bytes_per_pos(c, itemsize):
    """Bytes per lane-position of a (c, tile) VMEM block after sublane padding.

    Sublane granularity is 32 bytes per lane (8 x f32 / 16 x bf16 rows), so a
    (c, tile) block really occupies ceil(c / (32 // itemsize)) * 32 bytes per
    position, not c * itemsize.
    """
    rows_per_group = max(1, 32 // itemsize)
    return _cdiv(c, rows_per_group) * 32


def _vmem_capacity_bytes():
    try:
        return int(pltpu.get_tpu_info().vmem_capacity_bytes)
    except Exception:
        return 64 << 20          # v7x per-TC capacity: safe lower bound everywhere


def _pick_tile(hw, c, itemsize, vmem_budget_bytes):
    """Position-tile (lane) width from the *padded* double-buffered footprint."""
    hw128 = _round_up(hw, 128)
    per_pos = 2 * (_padded_bytes_per_pos(c, itemsize) + 32)   # 2x (logits + labels)
    tile = max(128, (vmem_budget_bytes // per_pos) // 128 * 128)
    # Bound the in-kernel lane-fold unroll, and keep >= 2 position tiles so the
    # chunk axis gives v7x's two TensorCores work even when N == 1.
    tile = min(tile, 16384, hw128, max(128, _round_up(_cdiv(hw, 2), 128)))
    return int(tile)


def _lane_fold(x, ways=8):
    """(1, T) -> (1, 128): sum the 128-wide slices of a lane-dense vector.

    Pure VPU adds; `ways` independent chains keep the dependency latency short.
    """
    n = x.shape[1] // 128
    if n == 1:
        return x
    parts = [x[:, i * 128:(i + 1) * 128] for i in range(n)]
    accs = list(parts[:min(ways, n)])
    for i in range(len(accs), n):
        accs[i % len(accs)] = accs[i % len(accs)] + parts[i]
    out = accs[0]
    for a in accs[1:]:
        out = out + a
    return out


def _ce_loss_kernel(*refs, ignore_label: int, has_weight: bool, has_ignore: bool,
                    needs_bound_mask: bool, tile: int, tpc: int, hw: int):
    if has_weight:
        (logits_ref, labels_ref, w_ref, num_ref, den_ref, acc_num, acc_den) = refs
    else:
        (logits_ref, labels_ref, num_ref, den_ref, acc_num, acc_den) = refs
        w_ref = None

    t = pl.program_id(2)

    @pl.when(t == 0)
    def _():
        acc_num[...] = jnp.zeros((1, 128), jnp.float32)
        acc_den[...] = jnp.zeros((1, 128), jnp.float32)

    logits = logits_ref[...].astype(jnp.float32)               # (C, T)
    labels = labels_ref[...]                                    # (1, T) int32
    c, tp = logits.shape

    # Numerically stable log-sum-exp over the class (sublane) axis.
    m = jnp.max(logits, axis=0, keepdims=True)                  # (1, T)
    lse = m + jnp.log(jnp.sum(jnp.exp(logits - m), axis=0, keepdims=True))

    # One one-hot compare, reused for the target logit and the class weight.
    cls = lax.broadcasted_iota(jnp.int32, (c, tp), 0)
    onehot = cls == labels                                      # (C, T) bool
    x_y = jnp.sum(jnp.where(onehot, logits, 0.0), axis=0, keepdims=True)
    nll = lse - x_y                                             # (1, T)
    # NOTE: out-of-range labels that are not ignore_index contribute `lse`
    # (x_y == 0) instead of raising like torch.nn.CrossEntropyLoss.

    # Validity mask: ignore_label and (only when statically required) the
    # global-position bound for the last partial / clamped-duplicate tile.
    mask = None
    if has_ignore:
        mask = labels != jnp.int32(ignore_label)
    if needs_bound_mask:
        block_id = pl.program_id(1) * tpc + t
        pos = block_id * tile + lax.broadcasted_iota(jnp.int32, (1, tp), 1)
        inbound = pos < hw
        mask = inbound if mask is None else jnp.logical_and(mask, inbound)

    if has_weight:
        w = w_ref[...].astype(jnp.float32)                      # (C, 1)
        w_y = jnp.sum(jnp.where(onehot, w, 0.0), axis=0, keepdims=True)  # (1, T)
        if mask is None:
            num_c = w_y * nll
            den_c = w_y
        else:
            # `where` (not multiply-by-zero) so garbage logits in masked lanes
            # (partial / duplicate tiles) cannot produce 0 * inf = NaN.
            num_c = jnp.where(mask, w_y * nll, 0.0)
            den_c = jnp.where(mask, w_y, 0.0)
    else:
        if mask is None:
            num_c = nll
            den_c = jnp.ones_like(nll)
        else:
            num_c = jnp.where(mask, nll, 0.0)
            den_c = mask.astype(jnp.float32)

    # Fold to 128 lanes and accumulate in the vreg-resident scratch.
    acc_num[...] += _lane_fold(num_c)
    acc_den[...] += _lane_fold(den_c)

    # Lane-dense (1, 128) store once per (N, chunk); final sum happens in JAX.
    @pl.when(t == pl.num_programs(2) - 1)
    def _():
        num_ref[...] = acc_num[...]
        den_ref[...] = acc_den[...]


def ce_loss(preds, gt, *, weight=None, ignore_label=None):
    """CrossEntropyLoss(preds, gt), reduction='mean', matching torch semantics.

    preds: (N, C, H, W) float logits (NCHW, like PyTorch); f32 or bf16.
    gt:    (N, H, W) integer labels
    weight: optional (C,) per-class weights
    ignore_label: optional label value to ignore
    """
    n, c, h, w = preds.shape
    hw = h * w
    itemsize = jnp.dtype(preds.dtype).itemsize
    has_weight = weight is not None
    has_ignore = ignore_label is not None
    ignore_val = int(ignore_label) if has_ignore else -100   # torch default -100

    # Free reshapes -- no transpose, no extra HBM pass over the logits.
    logits = preds.reshape(n, c, hw)
    labels = gt.reshape(n, 1, hw).astype(jnp.int32)

    vmem_cap = _vmem_capacity_bytes()
    budget = min(vmem_cap // 2, 48 << 20)          # <=48 MiB on 128 MiB parts, 32 MiB on v7x
    tile = _pick_tile(hw, c, itemsize, budget)

    total_tiles = _cdiv(hw, tile)
    num_chunks = 2 if total_tiles >= 2 else 1
    tpc = _cdiv(total_tiles, num_chunks)           # position tiles per chunk
    # Mask needed if the last tile is partial or a chunk has a clamped duplicate block.
    needs_bound_mask = (hw % tile != 0) or (num_chunks * tpc != total_tiles)

    if num_chunks * tpc == total_tiles:
        pos_map = lambda nn, ck, t: (nn, 0, ck * tpc + t)
    else:
        # Odd tile count: the last chunk's overhanging block is clamped onto the
        # last in-bounds tile; its contribution is masked out in-kernel.
        last = total_tiles - 1
        pos_map = lambda nn, ck, t: (nn, 0, jnp.minimum(ck * tpc + t, last))

    in_specs = [
        pl.BlockSpec((None, c, tile), pos_map),    # logits: C on sublanes, positions on lanes
        pl.BlockSpec((None, 1, tile), pos_map),    # labels: lane-dense int32
    ]
    inputs = [logits, labels]
    if has_weight:
        weight_arr = jnp.asarray(weight, dtype=jnp.float32).reshape(c, 1)
        # Tiny constant-index block; gathered in-kernel from the one-hot mask.
        in_specs.append(pl.BlockSpec((c, 1), lambda nn, ck, t: (0, 0)))
        inputs.append(weight_arr)

    out_map = lambda nn, ck, t: (nn, ck, 0, 0)
    out_spec = pl.BlockSpec((None, None, 1, 128), out_map)
    out_shape = jax.ShapeDtypeStruct((n, num_chunks, 1, 128), jnp.float32)

    # VMEM limit from the real (sublane-padded) double-buffered footprint.
    blk = tile * (_padded_bytes_per_pos(c, itemsize) + 32)   # one logits+labels buffer
    fixed = 8 * (8 * 128 * 4)                                # weight / scratch / out blocks
    vmem_limit = 2 * blk + fixed + (4 << 20)
    vmem_limit = int(min(max(vmem_limit, 16 << 20),
                         max(vmem_cap - (16 << 20), 32 << 20)))

    kernel = functools.partial(
        _ce_loss_kernel, ignore_label=ignore_val, has_weight=has_weight,
        has_ignore=has_ignore, needs_bound_mask=needs_bound_mask,
        tile=tile, tpc=tpc, hw=hw)

    num, den = pl.pallas_call(
        kernel,
        out_shape=(out_shape, out_shape),
        grid_spec=pltpu.PrefetchScalarGridSpec(
            num_scalar_prefetch=0,
            grid=(n, num_chunks, tpc),
            in_specs=in_specs,
            out_specs=[out_spec, out_spec],
            scratch_shapes=[pltpu.VMEM((1, 128), jnp.float32),
                            pltpu.VMEM((1, 128), jnp.float32)],
        ),
        compiler_params=pltpu.CompilerParams(
            dimension_semantics=("parallel", "parallel", "arbitrary"),
            vmem_limit_bytes=vmem_limit),
    )(*inputs)

    # Tiny final reduction over the (N, chunk, 128) lane partials in JAX.
    # NOTE: if every position is ignored, den == 0 and this returns NaN,
    # matching torch.nn.CrossEntropyLoss(reduction='mean').
    return jnp.sum(num) / jnp.sum(den)


def _reference_ce_loss(preds, gt, *, weight=None, ignore_label=None):
    """Pure-JAX reference mirroring torch.nn.CrossEntropyLoss semantics."""
    n, c, h, w = preds.shape
    logits = jnp.transpose(preds, (0, 2, 3, 1)).reshape(-1, c).astype(jnp.float32)
    labels = gt.reshape(-1).astype(jnp.int32)
    ignore_val = -100 if ignore_label is None else int(ignore_label)
    valid = labels != ignore_val
    safe_labels = jnp.where(valid, labels, 0)
    logp = jax.nn.log_softmax(logits, axis=-1)
    nll = -jnp.take_along_axis(logp, safe_labels[:, None], axis=1)[:, 0]
    if weight is None:
        wv = jnp.ones((c,), jnp.float32)
    else:
        wv = jnp.asarray(weight, jnp.float32)
    wy = wv[safe_labels]
    num = jnp.sum(jnp.where(valid, wy * nll, 0.0))
    den = jnp.sum(jnp.where(valid, wy, 0.0))
    return num / den


if __name__ == "__main__":
    key = jax.random.PRNGKey(0)
    k1, k2 = jax.random.split(key)

    N, C, H, W = 2, 4, 16, 16
    preds = jax.random.normal(k1, (N, C, H, W), dtype=jnp.float32)
    # labels in [0, C) with a few ignored pixels (label 255)
    gt = jax.random.randint(k2, (N, H, W), 0, C, dtype=jnp.int32)
    gt = gt.at[0, 0, :4].set(255)

    class_weight = jnp.array([1.0, 2.0, 0.5, 1.5], dtype=jnp.float32)
    ignore_label = 255

    # Weighted + ignore_index path
    loss = jax.block_until_ready(
        ce_loss(preds, gt, weight=class_weight, ignore_label=ignore_label))
    ref = _reference_ce_loss(preds, gt, weight=class_weight,
                             ignore_label=ignore_label)
    assert jnp.allclose(loss, ref, atol=1e-5, rtol=1e-5), (loss, ref)

    # Unweighted / no-ignore path (weight=None branch skips the weight input
    # and statically drops the ignore mask)
    loss2 = jax.block_until_ready(ce_loss(preds, jnp.clip(gt, 0, C - 1)))
    ref2 = _reference_ce_loss(preds, jnp.clip(gt, 0, C - 1))
    assert jnp.allclose(loss2, ref2, atol=1e-5, rtol=1e-5), (loss2, ref2)

    # Non-tile-aligned spatial size: exercises the in-kernel `pos < HW` mask
    # (no jnp.pad HBM pass).
    H2, W2 = 17, 11
    preds3 = jax.random.normal(k1, (1, C, H2, W2), dtype=jnp.float32)
    gt3 = jax.random.randint(k2, (1, H2, W2), 0, C, dtype=jnp.int32)
    loss3 = jax.block_until_ready(
        ce_loss(preds3, gt3, weight=class_weight, ignore_label=ignore_label))
    ref3 = _reference_ce_loss(preds3, gt3, weight=class_weight,
                              ignore_label=ignore_label)
    assert jnp.allclose(loss3, ref3, atol=1e-5, rtol=1e-5), (loss3, ref3)

    # Odd tile count: exercises the clamped-duplicate-block path that keeps
    # both v7x TensorCores busy even for N == 1.
    H4, W4 = 192, 256   # HW = 49152 = 3 * 16384 tiles
    preds4 = jax.random.normal(k1, (1, C, H4, W4), dtype=jnp.float32)
    gt4 = jax.random.randint(k2, (1, H4, W4), 0, C, dtype=jnp.int32)
    gt4 = gt4.at[0, 0, :32].set(255)
    loss4 = jax.block_until_ready(
        ce_loss(preds4, gt4, weight=class_weight, ignore_label=ignore_label))
    ref4 = _reference_ce_loss(preds4, gt4, weight=class_weight,
                              ignore_label=ignore_label)
    assert jnp.allclose(loss4, ref4, atol=1e-5, rtol=1e-5), (loss4, ref4)

    print("KERNEL_OK")
</pallas_src>

<mosaic_0001>
module attributes {stable_mosaic.version = 11 : i64} {
  func.func @_ce_loss_kernel(%arg0: i32, %arg1: i32, %arg2: i32, %arg3: memref<1x4x128xf32, #tpu.memory_space<vmem>>, %arg4: memref<1x1x128xi32, #tpu.memory_space<vmem>>, %arg5: memref<4x1xf32, #tpu.memory_space<vmem>>, %arg6: memref<1x1x1x128xf32, #tpu.memory_space<vmem>>, %arg7: memref<1x1x1x128xf32, #tpu.memory_space<vmem>>, %arg8: memref<1x128xf32, #tpu.memory_space<vmem>>, %arg9: memref<1x128xf32, #tpu.memory_space<vmem>>) attributes {dimension_semantics = [#tpu.dimension_semantics<parallel>, #tpu.dimension_semantics<parallel>, #tpu.dimension_semantics<arbitrary>], iteration_bounds = array<i64: 2, 2, 1>, scalar_prefetch = 0 : i64, scratch_operands = 2 : i64, tpu.core_type = #tpu.core_type<tc>, window_params = [{transform_indices = @transform_0, window_bounds = array<i64: 1, 4, 128>}, {transform_indices = @transform_1, window_bounds = array<i64: 1, 1, 128>}, {pipeline_mode = #tpu.pipeline_mode<synchronous>, transform_indices = @transform_2, window_bounds = array<i64: 4, 1>}, {transform_indices = @transform_3, window_bounds = array<i64: 1, 1, 1, 128>}, {transform_indices = @transform_4, window_bounds = array<i64: 1, 1, 1, 128>}]} {
    %c0_i32 = arith.constant 0 : i32
    %0 = arith.cmpi eq, %arg2, %c0_i32 : i32
    %1 = arith.extui %0 : i1 to i32
    %c0_i32_0 = arith.constant 0 : i32
    %2 = arith.cmpi ne, %1, %c0_i32_0 : i32
    scf.if %2 {
      %cst_25 = arith.constant 0.000000e+00 : f32
      %47 = vector.broadcast %cst_25 : f32 to vector<1x128xf32>
      %c0_26 = arith.constant 0 : index
      %c0_27 = arith.constant 0 : index
      %48 = vector.load %arg8[%c0_26, %c0_27] : memref<1x128xf32, #tpu.memory_space<vmem>>, vector<1x128xf32>
      tpu.vector_store %arg8[%c0_26, %c0_27], %47 {strides = array<i32>} : memref<1x128xf32, #tpu.memory_space<vmem>>, vector<1x128xf32>,
      %cst_28 = arith.constant 0.000000e+00 : f32
      %49 = vector.broadcast %cst_28 : f32 to vector<1x128xf32>
      %c0_29 = arith.constant 0 : index
      %c0_30 = arith.constant 0 : index
      %50 = vector.load %arg9[%c0_29, %c0_30] : memref<1x128xf32, #tpu.memory_space<vmem>>, vector<1x128xf32>
      tpu.vector_store %arg9[%c0_29, %c0_30], %49 {strides = array<i32>} : memref<1x128xf32, #tpu.memory_space<vmem>>, vector<1x128xf32>,
    } else {
    }
    %c0 = arith.constant 0 : index
    %c0_1 = arith.constant 0 : index
    %c0_2 = arith.constant 0 : index
    %3 = vector.load %arg3[%c0, %c0_1, %c0_2] : memref<1x4x128xf32, #tpu.memory_space<vmem>>, vector<1x4x128xf32>
    %4 = vector.shape_cast %3 : vector<1x4x128xf32> to vector<4x128xf32>
    %c0_3 = arith.constant 0 : index
    %c0_4 = arith.constant 0 : index
    %c0_5 = arith.constant 0 : index
    %5 = vector.load %arg4[%c0_3, %c0_4, %c0_5] : memref<1x1x128xi32, #tpu.memory_space<vmem>>, vector<1x1x128xi32>
    %6 = vector.shape_cast %5 : vector<1x1x128xi32> to vector<1x128xi32>
    %cst = arith.constant dense<0xFF800000> : vector<128xf32>
    %7 = vector.multi_reduction <maximumf>, %4, %cst [0] : vector<4x128xf32> to vector<128xf32>
    %8 = vector.shape_cast %7 : vector<128xf32> to vector<1x128xf32>
    %9 = vector.broadcast %8 : vector<1x128xf32> to vector<4x128xf32>
    %10 = arith.subf %4, %9 : vector<4x128xf32>
    %11 = math.exp %10 : vector<4x128xf32>
    %cst_6 = arith.constant dense<0.000000e+00> : vector<128xf32>
    %12 = vector.multi_reduction <add>, %11, %cst_6 [0] : vector<4x128xf32> to vector<128xf32>
    %13 = vector.shape_cast %12 : vector<128xf32> to vector<1x128xf32>
    %14 = math.log %13 : vector<1x128xf32>
    %15 = arith.addf %8, %14 : vector<1x128xf32>
    %16 = tpu.iota {dimensions = array<i32: 0>} : vector<4x128xi32>
    %17 = vector.broadcast %6 : vector<1x128xi32> to vector<4x128xi32>
    %18 = arith.cmpi eq, %16, %17 : vector<4x128xi32>
    %cst_7 = arith.constant 0.000000e+00 : f32
    %19 = vector.broadcast %cst_7 : f32 to vector<4x128xf32>
    %20 = arith.select %18, %4, %19 : vector<4x128xi1>, vector<4x128xf32>
    %cst_8 = arith.constant dense<0.000000e+00> : vector<128xf32>
    %21 = vector.multi_reduction <add>, %20, %cst_8 [0] : vector<4x128xf32> to vector<128xf32>
    %22 = vector.shape_cast %21 : vector<128xf32> to vector<1x128xf32>
    %23 = arith.subf %15, %22 : vector<1x128xf32>
    %c255_i32 = arith.constant 255 : i32
    %24 = vector.broadcast %c255_i32 : i32 to vector<1x128xi32>
    %25 = arith.cmpi ne, %6, %24 : vector<1x128xi32>
    %c0_9 = arith.constant 0 : index
    %c0_10 = arith.constant 0 : index
    %26 = vector.load %arg5[%c0_9, %c0_10] : memref<4x1xf32, #tpu.memory_space<vmem>>, vector<4x1xf32>
    %cst_11 = arith.constant 0.000000e+00 : f32
    %27 = vector.shape_cast %26 : vector<4x1xf32> to vector<4x1xf32>
    %28 = vector.broadcast %27 : vector<4x1xf32> to vector<4x128xf32>
    %29 = vector.broadcast %cst_11 : f32 to vector<4x128xf32>
    %30 = arith.select %18, %28, %29 : vector<4x128xi1>, vector<4x128xf32>
    %cst_12 = arith.constant dense<0.000000e+00> : vector<128xf32>
    %31 = vector.multi_reduction <add>, %30, %cst_12 [0] : vector<4x128xf32> to vector<128xf32>
    %32 = vector.shape_cast %31 : vector<128xf32> to vector<1x128xf32>
    %33 = arith.mulf %32, %23 : vector<1x128xf32>
    %cst_13 = arith.constant 0.000000e+00 : f32
    %34 = vector.broadcast %cst_13 : f32 to vector<1x128xf32>
    %35 = arith.select %25, %33, %34 : vector<1x128xi1>, vector<1x128xf32>
    %cst_14 = arith.constant 0.000000e+00 : f32
    %36 = vector.broadcast %cst_14 : f32 to vector<1x128xf32>
    %37 = arith.select %25, %32, %36 : vector<1x128xi1>, vector<1x128xf32>
    %c0_15 = arith.constant 0 : index
    %c0_16 = arith.constant 0 : index
    %38 = vector.load %arg8[%c0_15, %c0_16] : memref<1x128xf32, #tpu.memory_space<vmem>>, vector<1x128xf32>
    %39 = arith.addf %38, %35 : vector<1x128xf32>
    %c0_17 = arith.constant 0 : index
    %c0_18 = arith.constant 0 : index
    %40 = vector.load %arg8[%c0_17, %c0_18] : memref<1x128xf32, #tpu.memory_space<vmem>>, vector<1x128xf32>
    tpu.vector_store %arg8[%c0_17, %c0_18], %39 {strides = array<i32>} : memref<1x128xf32, #tpu.memory_space<vmem>>, vector<1x128xf32>,
    %c0_19 = arith.constant 0 : index
    %c0_20 = arith.constant 0 : index
    %41 = vector.load %arg9[%c0_19, %c0_20] : memref<1x128xf32, #tpu.memory_space<vmem>>, vector<1x128xf32>
    %42 = arith.addf %41, %37 : vector<1x128xf32>
    %c0_21 = arith.constant 0 : index
    %c0_22 = arith.constant 0 : index
    %43 = vector.load %arg9[%c0_21, %c0_22] : memref<1x128xf32, #tpu.memory_space<vmem>>, vector<1x128xf32>
    tpu.vector_store %arg9[%c0_21, %c0_22], %42 {strides = array<i32>} : memref<1x128xf32, #tpu.memory_space<vmem>>, vector<1x128xf32>,
    %c0_i32_23 = arith.constant 0 : i32
    %44 = arith.cmpi eq, %arg2, %c0_i32_23 : i32
    %45 = arith.extui %44 : i1 to i32
    %c0_i32_24 = arith.constant 0 : i32
    %46 = arith.cmpi ne, %45, %c0_i32_24 : i32
    scf.if %46 {
      %c0_25 = arith.constant 0 : index
      %c0_26 = arith.constant 0 : index
      %47 = vector.load %arg8[%c0_25, %c0_26] : memref<1x128xf32, #tpu.memory_space<vmem>>, vector<1x128xf32>
      %c0_27 = arith.constant 0 : index
      %c0_28 = arith.constant 0 : index
      %c0_29 = arith.constant 0 : index
      %c0_30 = arith.constant 0 : index
      %48 = vector.load %arg6[%c0_27, %c0_28, %c0_29, %c0_30] : memref<1x1x1x128xf32, #tpu.memory_space<vmem>>, vector<1x1x1x128xf32>
      %49 = vector.shape_cast %48 : vector<1x1x1x128xf32> to vector<1x128xf32>
      %50 = vector.shape_cast %47 : vector<1x128xf32> to vector<1x1x1x128xf32>
      tpu.vector_store %arg6[%c0_27, %c0_28, %c0_29, %c0_30], %50 {strides = array<i32>} : memref<1x1x1x128xf32, #tpu.memory_space<vmem>>, vector<1x1x1x128xf32>,
      %c0_31 = arith.constant 0 : index
      %c0_32 = arith.constant 0 : index
      %51 = vector.load %arg9[%c0_31, %c0_32] : memref<1x128xf32, #tpu.memory_space<vmem>>, vector<1x128xf32>
      %c0_33 = arith.constant 0 : index
      %c0_34 = arith.constant 0 : index
      %c0_35 = arith.constant 0 : index
      %c0_36 = arith.constant 0 : index
      %52 = vector.load %arg7[%c0_33, %c0_34, %c0_35, %c0_36] : memref<1x1x1x128xf32, #tpu.memory_space<vmem>>, vector<1x1x1x128xf32>
      %53 = vector.shape_cast %52 : vector<1x1x1x128xf32> to vector<1x128xf32>
      %54 = vector.shape_cast %51 : vector<1x128xf32> to vector<1x1x1x128xf32>
      tpu.vector_store %arg7[%c0_33, %c0_34, %c0_35, %c0_36], %54 {strides = array<i32>} : memref<1x1x1x128xf32, #tpu.memory_space<vmem>>, vector<1x1x1x128xf32>,
    } else {
    }
    return
  }
  func.func @transform_0(%arg0: i32, %arg1: i32, %arg2: i32) -> (i32, i32, i32) {
    %c1_i32 = arith.constant 1 : i32
    %0 = arith.muli %arg1, %c1_i32 : i32
    %1 = arith.addi %0, %arg2 : i32
    %c0_i32 = arith.constant 0 : i32
    %c0_i32_0 = arith.constant 0 : i32
    return %arg0, %c0_i32, %1 : i32, i32, i32
  }
  func.func @transform_1(%arg0: i32, %arg1: i32, %arg2: i32) -> (i32, i32, i32) {
    %c1_i32 = arith.constant 1 : i32
    %0 = arith.muli %arg1, %c1_i32 : i32
    %1 = arith.addi %0, %arg2 : i32
    %c0_i32 = arith.constant 0 : i32
    %c0_i32_0 = arith.constant 0 : i32
    return %arg0, %c0_i32, %1 : i32, i32, i32
  }
  func.func @transform_2(%arg0: i32, %arg1: i32, %arg2: i32) -> (i32, i32) {
    %c0_i32 = arith.constant 0 : i32
    %c0_i32_0 = arith.constant 0 : i32
    %c0_i32_1 = arith.constant 0 : i32
    return %c0_i32, %c0_i32_0 : i32, i32
  }
  func.func @transform_3(%arg0: i32, %arg1: i32, %arg2: i32) -> (i32, i32, i32, i32) {
    %c0_i32 = arith.constant 0 : i32
    %c0_i32_0 = arith.constant 0 : i32
    %c0_i32_1 = arith.constant 0 : i32
    return %arg0, %arg1, %c0_i32, %c0_i32_0 : i32, i32, i32, i32
  }
  func.func @transform_4(%arg0: i32, %arg1: i32, %arg2: i32) -> (i32, i32, i32, i32) {
    %c0_i32 = arith.constant 0 : i32
    %c0_i32_0 = arith.constant 0 : i32
    %c0_i32_1 = arith.constant 0 : i32
    return %arg0, %arg1, %c0_i32, %c0_i32_0 : i32, i32, i32, i32
  }
}

</mosaic_0001>

<llo_original>
// kernel: tpu_custom_call.1
$region0: #{tpu_custom_call.1}
  #allocation0 [shape = 'u32[]', space=smem, size = 0x4, offset = 0x4, fixed_abs, tag = 'smem constant byte address 0x4 - core index']
  #allocation1 [shape = 'u32[144,128]{1,0:T(1,128)}', space=vmem, size = 0x12000, scoped, tag = 'internal scratch']
  #allocation2 [shape = 'f32[1,128]{1,0:T(1,128)}', space=vmem, size = 0x200, scoped, tag = 'scratch operand']
  #allocation3 [shape = 'f32[1,128]{1,0:T(1,128)}', space=vmem, size = 0x200, scoped, tag = 'scratch operand']
  %s0 = inlined_call_operand.hbm [shape: f32[2,4,256], index: 0, kind: input, shape index: {}]
  %s1 = inlined_call_operand.vmem [shape: s32[2,1,256], index: 1, kind: input, shape index: {}]
  %s2 = inlined_call_operand.vmem [shape: f32[4,1], index: 2, kind: input, shape index: {}]
  %s3 = inlined_call_operand.hbm [shape: f32[2,2,1,128], index: 3, kind: output, shape index: {0}]
  %s4 = inlined_call_operand.hbm [shape: f32[2,2,1,128], index: 4, kind: output, shape index: {1}]
  %5 = xla_tuple %s3, %s4
  %s6 = sld [smem:[#allocation0]]
  $region65: #{tpu_custom_call.1} parent=0
    _
  %s8 = ssub.s32 1, %s6
  %s9 = scalar_select 0, %s8, %s6
  $region1: #{tpu_custom_call.1} parent=0
    #allocation4 [shape = 'u8[4096]{0}', space=vmem, size = 0x1000, scoped, tag = 'input window, operand 0']
    #allocation5 [shape = 's32[2]{0}', space=sflag, size = 0x8, scoped, tag = 'scoped memory for tpu_custom_call.1']
    #allocation6 [shape = 's32[2]{0}', space=sflag, size = 0x8, scoped, tag = 'scoped memory for tpu_custom_call.1']
    #allocation7 [shape = 'u8[1024]{0}', space=vmem, size = 0x400, scoped, tag = 'output window, operand 0']
    #allocation8 [shape = 'u8[1024]{0}', space=vmem, size = 0x400, scoped, tag = 'output window, operand 1']
    #allocation9 [shape = 's32[2]{0}', space=sflag, size = 0x8, scoped, tag = 'scoped memory for tpu_custom_call.1']
    %10 = vsyncpa [#allocation5], 0
    %s11 = scalar_lea.sflag [#allocation5], 1
    %12 = vsyncpa %s11, 0
    %13 = vsyncpa [#allocation6], 0
    %s14 = scalar_lea.sflag [#allocation6], 1
    %15 = vsyncpa %s14, 0
    %16 = vsyncpa [#allocation9], 0
    %s17 = scalar_lea.sflag [#allocation9], 1
    %18 = vsyncpa %s17, 0
    loop: start=0, step=1, limit=6
    $region2: #{tpu_custom_call.1} parent=1 // loop_pre_header
      _
    $region3: #{tpu_custom_call.1} parent=1 // loop_header
      %s20 = sphi 0, %s24
      %p21 = scmp.ge.s32.totalorder %s20, 6
      %s27 = sphi 0, %s46
      %s28 = sphi 0, %s42
      %s29 = sphi 0, %s38
      %s30 = sphi 0, %s27
      %s31 = sphi 0, %s28
      %s32 = sphi 0, %s29
      %s33 = sphi 0, %s30
      %s34 = sphi 0, %s31
      %s35 = sphi 0, %s32
      %s53 = sphi 0, %s55
      %s56 = sphi 0, %s53
      %s57 = sphi 0, %s56
      %s73 = sphi 0, %s57
      %s83 = sphi 0, %s85
      %s86 = sphi 0, %s83
      %s87 = sphi 0, %s86
      %s103 = sphi 0, %s87
      %s107 = sphi 0, %s107
      %s109 = sphi 0, %s107
      %s110 = sphi 0, %s109
      %s124 = sphi 0, %s110
      %s132 = sphi 0, %s134
      %s135 = sphi 0, %s132
      %s136 = sphi 0, %s135
      %s152 = sphi 0, %s136
      %s160 = sphi 0, %s162
      %s163 = sphi 0, %s160
      %s164 = sphi 0, %s163
      %s180 = sphi 0, %s164
    $region4: #{tpu_custom_call.1} parent=1 // loop_header_branch
      %23 = sbr.rel (%p21) target = $region8
    $region5: #{tpu_custom_call.1} parent=1 // loop_body
      %s25 = ssub.s32 %s20, 1
      %s26 = ssub.s32 %s20, 2
      %s36 = sadd.s32 1, %s29
      %p37 = scmp.ge.s32.totalorder %s36, 1
      %s38 = scalar_select %p37, 0, %s36
      %s39 = sadd.s32 1, %s28
      %s40 = scalar_select %p37, %s39, %s28
      %p41 = scmp.ge.s32.totalorder %s40, 2
      %s42 = scalar_select %p41, 0, %s40
      %s43 = sadd.s32 1, %s27
      %s44 = scalar_select %p41, %s43, %s27
      %p45 = scmp.ge.s32.totalorder %s44, 2
      %s46 = scalar_select %p45, 0, %s44
      %s47 = sadd.s32 %s28, %s29
      %s48 = sadd.s32 %s42, %s38
      %s49 = ssub.s32 %s27, %s46
      %s50 = ssub.s32 %s47, %s48
      %s51 = sor.u32 %s49, %s50
      %p52 = scmp.eq.s32.totalorder %s51, 0
      %s54 = sadd.s32 %s53, 1
      %s55 = scalar_select %p52, %s53, %s54
      %p58 = pneg %p52
      %p59 = scmp.eq.s32.totalorder %s20, 3
      %p60 = por %p58, %p59
      %p61 = scmp.ne.s32.totalorder %s53, %s56
      %p62 = scmp.eq.s32.totalorder %s20, 0
      %p63 = por %p61, %p62
      %p64 = scmp.ne.s32.totalorder %s53, %s56
      %p65 = scmp.eq.s32.totalorder %s25, 3
      %p66 = por %p64, %p65
      %p67 = scmp.ne.s32.totalorder %s56, %s57
      %p68 = scmp.eq.s32.totalorder %s25, 0
      %p69 = por %p67, %p68
      %p70 = scmp.ne.s32.totalorder %s56, %s57
      %p71 = scmp.eq.s32.totalorder %s26, 3
      %p72 = por %p70, %p71
      %p74 = scmp.ne.s32.totalorder %s57, %s73
      %p75 = scmp.eq.s32.totalorder %s26, 0
      %p76 = por %p74, %p75
      %s77 = sadd.s32 %s28, %s29
      %s78 = sadd.s32 %s42, %s38
      %s79 = ssub.s32 %s27, %s46
      %s80 = ssub.s32 %s77, %s78
      %s81 = sor.u32 %s79, %s80
      %p82 = scmp.eq.s32.totalorder %s81, 0
      %s84 = sadd.s32 %s83, 1
      %s85 = scalar_select %p82, %s83, %s84
      %p88 = pneg %p82
      %p89 = scmp.eq.s32.totalorder %s20, 3
      %p90 = por %p88, %p89
      %p91 = scmp.ne.s32.totalorder %s83, %s86
      %p92 = scmp.eq.s32.totalorder %s20, 0
      %p93 = por %p91, %p92
      %p94 = scmp.ne.s32.totalorder %s83, %s86
      %p95 = scmp.eq.s32.totalorder %s25, 3
      %p96 = por %p94, %p95
      %p97 = scmp.ne.s32.totalorder %s86, %s87
      %p98 = scmp.eq.s32.totalorder %s25, 0
      %p99 = por %p97, %p98
      %p100 = scmp.ne.s32.totalorder %s86, %s87
      %p101 = scmp.eq.s32.totalorder %s26, 3
      %p102 = por %p100, %p101
      %p104 = scmp.ne.s32.totalorder %s87, %s103
      %p105 = scmp.eq.s32.totalorder %s26, 0
      %p106 = por %p104, %p105
      %s108 = sadd.s32 %s107, 1
      %p111 = scmp.eq.s32.totalorder %s20, 3
      %p112 = scmp.ne.s32.totalorder %s107, %s109
      %p113 = scmp.eq.s32.totalorder %s20, 0
      %p114 = por %p112, %p113
      %p115 = scmp.ne.s32.totalorder %s107, %s109
      %p116 = scmp.eq.s32.totalorder %s25, 3
      %p117 = por %p115, %p116
      %p118 = scmp.ne.s32.totalorder %s109, %s110
      %p119 = scmp.eq.s32.totalorder %s25, 0
      %p120 = por %p118, %p119
      %p121 = scmp.ne.s32.totalorder %s109, %s110
      %p122 = scmp.eq.s32.totalorder %s26, 3
      %p123 = por %p121, %p122
      %p125 = scmp.ne.s32.totalorder %s110, %s124
      %p126 = scmp.eq.s32.totalorder %s26, 0
      %p127 = por %p125, %p126
      %s128 = ssub.s32 %s27, %s46
      %s129 = ssub.s32 %s28, %s42
      %s130 = sor.u32 %s128, %s129
      %p131 = scmp.eq.s32.totalorder %s130, 0
      %s133 = sadd.s32 %s132, 1
      %s134 = scalar_select %p131, %s132, %s133
      %p137 = pneg %p131
      %p138 = scmp.eq.s32.totalorder %s20, 3
      %p139 = por %p137, %p138
      %p140 = scmp.ne.s32.totalorder %s132, %s135
      %p141 = scmp.eq.s32.totalorder %s20, 0
      %p142 = por %p140, %p141
      %p143 = scmp.ne.s32.totalorder %s132, %s135
      %p144 = scmp.eq.s32.totalorder %s25, 3
      %p145 = por %p143, %p144
      %p146 = scmp.ne.s32.totalorder %s135, %s136
      %p147 = scmp.eq.s32.totalorder %s25, 0
      %p148 = por %p146, %p147
      %p149 = scmp.ne.s32.totalorder %s135, %s136
      %p150 = scmp.eq.s32.totalorder %s26, 3
      %p151 = por %p149, %p150
      %p153 = scmp.ne.s32.totalorder %s136, %s152
      %p154 = scmp.eq.s32.totalorder %s26, 0
      %p155 = por %p153, %p154
      %s156 = ssub.s32 %s27, %s46
      %s157 = ssub.s32 %s28, %s42
      %s158 = sor.u32 %s156, %s157
      %p159 = scmp.eq.s32.totalorder %s158, 0
      %s161 = sadd.s32 %s160, 1
      %s162 = scalar_select %p159, %s160, %s161
      %p165 = pneg %p159
      %p166 = scmp.eq.s32.totalorder %s20, 3
      %p167 = por %p165, %p166
      %p168 = scmp.ne.s32.totalorder %s160, %s163
      %p169 = scmp.eq.s32.totalorder %s20, 0
      %p170 = por %p168, %p169
      %p171 = scmp.ne.s32.totalorder %s160, %s163
      %p172 = scmp.eq.s32.totalorder %s25, 3
      %p173 = por %p171, %p172
      %p174 = scmp.ne.s32.totalorder %s163, %s164
      %p175 = scmp.eq.s32.totalorder %s25, 0
      %p176 = por %p174, %p175
      %p177 = scmp.ne.s32.totalorder %s163, %s164
      %p178 = scmp.eq.s32.totalorder %s26, 3
      %p179 = por %p177, %p178
      %p181 = scmp.ne.s32.totalorder %s164, %s180
      %p182 = scmp.eq.s32.totalorder %s26, 0
      %p183 = por %p181, %p182
      %p184 = scmp.le.s32.totalorder 1, %s20
      %p185 = scmp.lt.s32.totalorder %s20, 5
      %p186 = pnand %p184, %p185
      %p187 = pneg %p186
      // Predicated region
      $region9: #{tpu_custom_call.1} parent=5 // pred_check
        _
      $region10: #{tpu_custom_call.1} parent=5 // pred_check_branch
        %189 = sbr.rel (%p186) target = $region12
      $region11: #{tpu_custom_call.1} parent=5 // pred_region
        %s190 = ssub.s32 %s20, 1
        // Predicated region
        $region13: #{tpu_custom_call.1} parent=11 // pred_check
          %p191 = pneg %p120
        $region14: #{tpu_custom_call.1} parent=11 // pred_check_branch
          %193 = sbr.rel (%p191) target = $region16
        $region15: #{tpu_custom_call.1} parent=11 // pred_region
          _
        $region16: #{tpu_custom_call.1} parent=11 // pred_fallthru
          _
      $region12: #{tpu_custom_call.1} parent=5 // pred_fallthru
        _
      %p194 = scmp.lt.s32.totalorder %s20, 4
      // Predicated region
      $region17: #{tpu_custom_call.1} parent=5 // pred_check
        %p195 = pneg %p194
      $region18: #{tpu_custom_call.1} parent=5 // pred_check_branch
        %197 = sbr.rel (%p195) target = $region20
      $region19: #{tpu_custom_call.1} parent=5 // pred_region
        // Predicated region
        $region21: #{tpu_custom_call.1} parent=19 // pred_check
          %p198 = pneg %p63
        $region22: #{tpu_custom_call.1} parent=19 // pred_check_branch
          %200 = sbr.rel (%p198) target = $region24
        $region23: #{tpu_custom_call.1} parent=19 // pred_region
          %s201 = sand.u32 %s53, 1
          %s202 = scalar_lea.sflag [#allocation5], %s201
          %s203 = sand.u32 %s53, 1
          %s204 = smul.addr %s203, 4
          %s205 = scalar_lea.vmem [#allocation4], %s204
          %s206 = sadd.s32 %s28, %s29
          %s208 = ssub.s32 64, 64
          %209 = vsyncadd %s202, %s208
          %s210 = smul.addr %s27, 2
          %s211 = sadd.s32 %s206, %s210
          %s212 = smul.addr %s211, 64
          %s213 = scalar_lea.hbm %s0, %s212
          %s215 = sshll.u32 %s205, 4
          %s216 = int_to_ptr.vmem [resolvable:$true] %s215
          %218 = dma.hbm_to_vmem [thread:$0]  %s213, 64, %s216, %s202
        $region24: #{tpu_custom_call.1} parent=19 // pred_fallthru
          _
        // Predicated region
        $region25: #{tpu_custom_call.1} parent=19 // pred_check
          %p219 = pneg %p93
        $region26: #{tpu_custom_call.1} parent=19 // pred_check_branch
          %221 = sbr.rel (%p219) target = $region28
        $region27: #{tpu_custom_call.1} parent=19 // pred_region
          %s222 = sadd.s32 %s28, %s29
          %p223 = scmp.lt.s32.totalorder %s27, 1
          %s224 = scalar_select %p223, %s27, 1
          %p225 = scmp.lt.s32.totalorder %s222, 1
          %s226 = scalar_select %p225, %s222, 1
          %s227 = smul.addr %s224, 2
          %s228 = sadd.s32 %s226, %s227
          %s229 = scalar_lea.vmem %s1, %s228
          %s230 = sadd.s32 %s28, %s29
        $region28: #{tpu_custom_call.1} parent=19 // pred_fallthru
          _
      $region20: #{tpu_custom_call.1} parent=5 // pred_fallthru
        _
      %p231 = scmp.le.s32.totalorder 1, %s20
      %p232 = scmp.lt.s32.totalorder %s20, 5
      %p233 = pnand %p231, %p232
      %p234 = pneg %p233
      // Predicated region
      $region29: #{tpu_custom_call.1} parent=5 // pred_check
        _
      $region30: #{tpu_custom_call.1} parent=5 // pred_check_branch
        %236 = sbr.rel (%p233) target = $region32
      $region31: #{tpu_custom_call.1} parent=5 // pred_region
        %s237 = ssub.s32 %s20, 1
        %s238 = sand.u32 %s56, 1
        %s239 = scalar_lea.sflag [#allocation5], %s238
        %s240 = sand.u32 %s56, 1
        %s241 = smul.addr %s240, 4
        %s242 = scalar_lea.vmem [#allocation4], %s241
        // Predicated region
        $region33: #{tpu_custom_call.1} parent=31 // pred_check
          %p243 = pneg %p69
        $region34: #{tpu_custom_call.1} parent=31 // pred_check_branch
          %245 = sbr.rel (%p243) target = $region36
        $region35: #{tpu_custom_call.1} parent=31 // pred_region
          %246 = dma.done %s239, 64
        $region36: #{tpu_custom_call.1} parent=31 // pred_fallthru
          _
        %s247 = sand.u32 %s56, 1
        %s248 = scalar_lea.sflag [#allocation5], %s247
        %s249 = sand.u32 %s56, 1
        %s250 = smul.addr %s249, 4
        %s251 = scalar_lea.vmem [#allocation4], %s250
        %p252 = pneg %p69
        %p253 = pneg %p66
        %s254 = sadd.s32 %s31, %s32
        %p255 = scmp.lt.s32.totalorder %s30, 1
        %s256 = scalar_select %p255, %s30, 1
        %p257 = scmp.lt.s32.totalorder %s254, 1
        %s258 = scalar_select %p257, %s254, 1
        %s259 = smul.addr %s256, 2
        %s260 = sadd.s32 %s258, %s259
        %s261 = scalar_lea.vmem %s1, %s260
        %p262 = pneg %p99
        %p263 = pneg %p96
        %p264 = pneg %p120
        %p265 = pneg %p117
        %p266 = pneg %p148
        %p267 = pneg %p145
        %s268 = sand.u32 %s135, 1
        %s269 = scalar_lea.sflag [#allocation6], %s268
        %s270 = sand.u32 %s135, 1
        %s271 = scalar_lea.vmem [#allocation7], %s270
        %p272 = pneg %p176
        %p273 = pneg %p173
        %s274 = sand.u32 %s163, 1
        %s275 = scalar_lea.sflag [#allocation9], %s274
        %s276 = sand.u32 %s163, 1
        %s277 = scalar_lea.vmem [#allocation8], %s276
        %s278 = sadd.s32 %s31, %s32
        %s279 = sadd.s32 %s31, %s32
        %p280 = scmp.lt.s32.totalorder %s30, 1
        %s281 = scalar_select %p280, %s30, 1
        %p282 = scmp.lt.s32.totalorder %s279, 1
        %s283 = scalar_select %p282, %s279, 1
        %s284 = smul.addr %s281, 2
        %s285 = sadd.s32 %s283, %s284
        %s286 = scalar_lea.vmem %s1, %s285
        %s287 = sadd.s32 %s31, %s32
        %p288 = scmp.eq.s32.totalorder %s32, 0
        // Predicated region
        $region37: #{tpu_custom_call.1} parent=31 // pred_check
          %p289 = pneg %p288
        $region38: #{tpu_custom_call.1} parent=31 // pred_check_branch
          %291 = sbr.rel (%p289) target = $region40
        $region39: #{tpu_custom_call.1} parent=31 // pred_region
          %292 = vst [vmem:[#allocation2] sm:$0x1] 0.0
          %293 = vst [vmem:[#allocation3] sm:$0x1] 0.0
        $region40: #{tpu_custom_call.1} parent=31 // pred_fallthru
          _
        %v294 = vld [vmem:[%s242] sm:$0xf]
        %v295 = vld [vmem:[%s286] sm:$0x1]
        %vm296 = vcmask 1043456
        %v297 = vsel %vm296, %v294, -inf
        %v298 = vrot.slane %v297, 4
        %v299 = vmax.f32 %v297, %v298
        %v300 = vrot.slane %v299, 2
        %v301 = vmax.f32 %v299, %v300
        %v302 = vrot.slane %v301, 1
        %v303 = vmax.f32 %v301, %v302
        %v304 = vsub.f32 %v294, %v303
        %v305 = vmul.f32 %v304, 1.442695
        %v306 = vpow.pop %v305
        %v307 = vsel %vm296, %v306, 0.0
        %v308 = vrot.slane %v307, 4
        %v309 = vadd.f32 %v307, %v308
        %v310 = vrot.slane %v309, 2
        %v311 = vadd.f32 %v309, %v310
        %v312 = vrot.slane %v311, 1
        %v313 = vadd.f32 %v311, %v312
        %v314 = vlog2.pop %v313
        %v315 = vmul.f32 %v314, 0.6931472
        %v316 = vadd.f32 %v303, %v315
        %v317 = vlaneseq
        %v318 = vshrl.u32 %v317, 7
        %v319 = vlaneseq
        %v320 = vshrl.u32 %v319, 7
        %v321 = vsub.s32 0, %v320
        %v322 = vrot.slane %v295, %v321
        %vm323 = vcmp.eq.s32.totalorder %v318, %v322
        %v324 = vsel %vm323, %v294, 0.0
        %v325 = vsel %vm296, %v324, 0.0
        %v326 = vrot.slane %v325, 4
        %v327 = vadd.f32 %v325, %v326
        %v328 = vrot.slane %v327, 2
        %v329 = vadd.f32 %v327, %v328
        %v330 = vrot.slane %v329, 1
        %v331 = vadd.f32 %v329, %v330
        %v332 = vsub.f32 %v316, %v331
        %vm333 = vcmp.ne.s32.totalorder %v295, 255
        %v334 = vld [vmem:[%s2] sm:$0xf]
        %336 = vset.pattern.permute.xlu0 0
        %337 = vperm.xlu0 %336, %v334
        %v338 = vpop.permute.xlu0 %337
        %v340 = vsel %vm323, %v338, 0.0
        %v341 = vsel %vm296, %v340, 0.0
        %v342 = vrot.slane %v341, 4
        %v343 = vadd.f32 %v341, %v342
        %v344 = vrot.slane %v343, 2
        %v345 = vadd.f32 %v343, %v344
        %v346 = vrot.slane %v345, 1
        %v347 = vadd.f32 %v345, %v346
        %v348 = vmul.f32 %v347, %v332
        %v349 = vsel %vm333, %v348, 0.0
        %v350 = vsel %vm333, %v347, 0.0
        %v351 = vld [vmem:[#allocation2] sm:$0x1]
        %v352 = vadd.f32 %v351, %v349
        %353 = vst [vmem:[#allocation2] sm:$0x1] %v352
        %v354 = vld [vmem:[#allocation3] sm:$0x1]
        %v355 = vadd.f32 %v354, %v350
        %356 = vst [vmem:[#allocation3] sm:$0x1] %v355
        // Predicated region
        $region41: #{tpu_custom_call.1} parent=31 // pred_check
          %p357 = pneg %p288
        $region42: #{tpu_custom_call.1} parent=31 // pred_check_branch
          %359 = sbr.rel (%p357) target = $region44
        $region43: #{tpu_custom_call.1} parent=31 // pred_region
          %v360 = vld [vmem:[#allocation2] sm:$0x1]
          %361 = vst [vmem:[%s271] sm:$0x1] %v360
          %v362 = vld [vmem:[#allocation3] sm:$0x1]
          %363 = vst [vmem:[%s277] sm:$0x1] %v362
        $region44: #{tpu_custom_call.1} parent=31 // pred_fallthru
          _
        %s364 = sand.u32 %s135, 1
        %s365 = scalar_lea.sflag [#allocation6], %s364
        %s366 = sand.u32 %s135, 1
        %s367 = scalar_lea.vmem [#allocation7], %s366
        %s368 = sand.u32 %s163, 1
        %s369 = scalar_lea.sflag [#allocation9], %s368
        %s370 = sand.u32 %s163, 1
        %s371 = scalar_lea.vmem [#allocation8], %s370
        // Predicated region
        $region45: #{tpu_custom_call.1} parent=31 // pred_check
          %p372 = pneg %p145
        $region46: #{tpu_custom_call.1} parent=31 // pred_check_branch
          %374 = sbr.rel (%p372) target = $region48
        $region47: #{tpu_custom_call.1} parent=31 // pred_region
          %s376 = ssub.s32 16, 16
          %377 = vsyncadd %s365, %s376
          %s378 = smul.addr %s30, 2
          %s379 = sadd.s32 %s31, %s378
          %s380 = smul.addr %s379, 16
          %s381 = scalar_lea.hbm %s3, %s380
          %s383 = sshll.u32 %s367, 4
          %s384 = int_to_ptr.vmem [resolvable:$true] %s383
          %386 = dma.vmem_to_hbm [thread:$0]  %s384, 16, %s381, %s365
        $region48: #{tpu_custom_call.1} parent=31 // pred_fallthru
          _
        // Predicated region
        $region49: #{tpu_custom_call.1} parent=31 // pred_check
          %p387 = pneg %p173
        $region50: #{tpu_custom_call.1} parent=31 // pred_check_branch
          %389 = sbr.rel (%p387) target = $region52
        $region51: #{tpu_custom_call.1} parent=31 // pred_region
          %s391 = ssub.s32 16, 16
          %392 = vsyncadd %s369, %s391
          %s393 = smul.addr %s30, 2
          %s394 = sadd.s32 %s31, %s393
          %s395 = smul.addr %s394, 16
          %s396 = scalar_lea.hbm %s4, %s395
          %s398 = sshll.u32 %s371, 4
          %s399 = int_to_ptr.vmem [resolvable:$true] %s398
          %401 = dma.vmem_to_hbm [thread:$0]  %s399, 16, %s396, %s369
        $region52: #{tpu_custom_call.1} parent=31 // pred_fallthru
          _
      $region32: #{tpu_custom_call.1} parent=5 // pred_fallthru
        _
      %p402 = scmp.le.s32.totalorder 2, %s20
      // Predicated region
      $region53: #{tpu_custom_call.1} parent=5 // pred_check
        %p403 = pneg %p402
      $region54: #{tpu_custom_call.1} parent=5 // pred_check_branch
        %405 = sbr.rel (%p403) target = $region56
      $region55: #{tpu_custom_call.1} parent=5 // pred_region
        %s406 = ssub.s32 %s20, 2
        // Predicated region
        $region57: #{tpu_custom_call.1} parent=55 // pred_check
          %p407 = pneg %p151
        $region58: #{tpu_custom_call.1} parent=55 // pred_check_branch
          %409 = sbr.rel (%p407) target = $region60
        $region59: #{tpu_custom_call.1} parent=55 // pred_region
          %s410 = sand.u32 %s136, 1
          %s411 = scalar_lea.sflag [#allocation6], %s410
          %s412 = sand.u32 %s136, 1
          %s413 = scalar_lea.vmem [#allocation7], %s412
          %414 = dma.done %s411, 16
        $region60: #{tpu_custom_call.1} parent=55 // pred_fallthru
          _
        // Predicated region
        $region61: #{tpu_custom_call.1} parent=55 // pred_check
          %p415 = pneg %p179
        $region62: #{tpu_custom_call.1} parent=55 // pred_check_branch
          %417 = sbr.rel (%p415) target = $region64
        $region63: #{tpu_custom_call.1} parent=55 // pred_region
          %s418 = sand.u32 %s164, 1
          %s419 = scalar_lea.sflag [#allocation9], %s418
          %s420 = sand.u32 %s164, 1
          %s421 = scalar_lea.vmem [#allocation8], %s420
          %422 = dma.done %s419, 16
        $region64: #{tpu_custom_call.1} parent=55 // pred_fallthru
          _
      $region56: #{tpu_custom_call.1} parent=5 // pred_fallthru
        _
    $region6: #{tpu_custom_call.1} parent=1 // loop_footer
      %s24 = sadd.s32 1, %s20
    $region7: #{tpu_custom_call.1} parent=1 // loop_footer_branch
      %19 = sbr.rel target = $region3
    $region8: #{tpu_custom_call.1} parent=1 // loop_exit
      _
    %423 = vsyncpa [#allocation5], 1
    %s424 = scalar_lea.sflag [#allocation5], 1
    %425 = vsyncpa %s424, 1
    %426 = vsyncpa [#allocation6], 1
    %s427 = scalar_lea.sflag [#allocation6], 1
    %428 = vsyncpa %s427, 1
    %429 = vsyncpa [#allocation9], 1
    %s430 = scalar_lea.sflag [#allocation9], 1
    %431 = vsyncpa %s430, 1

</llo_original>
